<compile_context>
chip_gen: v6e
topology: v6e:2x2x1
jax: 0.10.0
libtpu: 0.0.40
codegen_flags: <defaults>
</compile_context>

<pallas_src>
import jax
import jax.numpy as jnp
from jax.experimental import pallas as pl
from jax.experimental.pallas import tpu as pltpu


def _round_up(x: int, m: int) -> int:
    return ((x + m - 1) // m) * m


def _pick_tile(s: int, ts: int) -> int:
    """Sequence-tile selection.

    * bf16 packs two rows per sublane -> keep the tile (and the zero-pad) a
      multiple of 16 rows so packed-row masking/relayout never triggers.
    * When S is large enough, guarantee >= 2 grid steps so the "parallel" grid
      axis can shard across v7x's two TensorCores.
    """
    s16 = _round_up(s, 16)
    ts = _round_up(min(ts, s16), 16)
    if s16 > 256 and s16 <= ts:  # enough work to split, but only one tile -> split in two
        ts = _round_up((s16 + 1) // 2, 16)
    return ts


def toy_linear_kernel(x_ref, w1_ref, w2_ref, w3_ref, o_ref):
    # x_ref: (TS, m)   w1_ref: (m, n)   w2_ref: (n, k)   w3_ref: (1, k)
    # o_ref: (1, 1, TS)  -- lane-dense output block (unmasked vst).
    x = x_ref[...]
    # linear1 / linear2 on the MXU: f32 accumulate, re-cast to bf16 like torch.
    h1 = jnp.dot(x, w1_ref[...], preferred_element_type=jnp.float32).astype(x.dtype)
    h2 = jnp.dot(h1, w2_ref[...], preferred_element_type=jnp.float32).astype(x.dtype)
    # linear3 (out_features == 1): VPU broadcast-multiply + XLU lane reduce in f32
    # instead of an N=1 MXU matmul (keeps the MXU free; VPU/XLU slots are idle here).
    w3f = w3_ref[...].astype(jnp.float32)                                   # (1, k)
    h3 = jnp.sum(h2.astype(jnp.float32) * w3f, axis=-1, keepdims=True)      # (TS, 1)
    # (TS, 1) -> (1, TS): sublane->lane transpose rides in the otherwise-idle XLU
    # slot and makes the per-tile store lane-dense.
    o_ref[...] = jnp.transpose(h3)[None].astype(o_ref.dtype)


def toy_linear_model(x, w1, w2, w3, *, ts=512):
    """x: (1, S, m); w1: (m, n); w2: (n, k); w3: (k, 1).  Returns (1, S, 1)."""
    b, s, m = x.shape
    assert b == 1
    n = w1.shape[1]
    k = w2.shape[1]

    ts = _pick_tile(s, ts)
    s_pad = _round_up(s, ts)
    num_tiles = s_pad // ts

    x2d = x.reshape(s, m)
    if s_pad != s:
        # Tail tile: zero rows (multiple of 16), dead work, sliced off below.
        x2d = jnp.pad(x2d, ((0, s_pad - s), (0, 0)))
    w3_row = w3.reshape(1, k)

    itemsize = jnp.dtype(x.dtype).itemsize
    cost = pl.CostEstimate(
        flops=2 * s_pad * (m * n + n * k + k),
        transcendentals=0,
        bytes_accessed=itemsize * (s_pad * m + m * n + n * k + k + s_pad),
    )

    out = pl.pallas_call(
        toy_linear_kernel,
        out_shape=jax.ShapeDtypeStruct((num_tiles, 1, ts), x.dtype),
        grid_spec=pltpu.PrefetchScalarGridSpec(
            num_scalar_prefetch=0,
            grid=(num_tiles,),
            in_specs=[
                # Activations: a fresh (ts, m) tile each grid step -> double-buffered stream.
                pl.BlockSpec((ts, m), lambda i: (i, 0)),
                # Weights: constant block index -> DMA'd once, then VMEM-resident.
                # (pl.Buffered(1) on these would halve buffering; skipped as it's noise
                #  at ~330 KB and only matters if m/n/k are scaled up on v7x.)
                pl.BlockSpec((m, n), lambda i: (0, 0)),
                pl.BlockSpec((n, k), lambda i: (0, 0)),
                pl.BlockSpec((1, k), lambda i: (0, 0)),
            ],
            # Lane-dense output: one (1, ts) row of results per grid step.
            out_specs=pl.BlockSpec((1, 1, ts), lambda i: (i, 0, 0)),
        ),
        compiler_params=pltpu.CompilerParams(
            # Seq tiles are independent -> shard across v7x's 2 TCs; harmless on v5e/v6e.
            dimension_semantics=("parallel",),
        ),
        cost_estimate=cost,
    )(x2d, w1, w2, w3_row)

    return out.reshape(s_pad)[:s].reshape(1, s, 1)


def init_params(key, m, n, k, dtype=jnp.bfloat16):
    """Deterministic init mimicking torch.nn.Linear default U(-1/sqrt(in), 1/sqrt(in)).
    Weights are stored as (in_features, out_features) — transposed vs. PyTorch."""
    k1, k2, k3 = jax.random.split(key, 3)
    w1 = jax.random.uniform(k1, (m, n), jnp.float32, -1.0, 1.0) / jnp.sqrt(m)
    w2 = jax.random.uniform(k2, (n, k), jnp.float32, -1.0, 1.0) / jnp.sqrt(n)
    w3 = jax.random.uniform(k3, (k, 1), jnp.float32, -1.0, 1.0) / jnp.sqrt(k)
    return w1.astype(dtype), w2.astype(dtype), w3.astype(dtype)


def _reference(x, w1, w2, w3):
    """Pure-JAX reference with the same per-layer bf16 rounding as the torch model."""
    s = x.shape[1]
    h = x.reshape(s, -1)
    for w in (w1, w2, w3):
        h = jnp.dot(h, w, preferred_element_type=jnp.float32).astype(jnp.bfloat16)
    return h.reshape(1, s, 1)


if __name__ == "__main__":
    # Module defaults: m=512, n=256, k=128; example_inputs default sequence_length=10.
    M, N, K = 512, 256, 128
    key = jax.random.PRNGKey(0)
    kx, kw, kx2 = jax.random.split(key, 3)
    w1, w2, w3 = init_params(kw, M, N, K, dtype=jnp.bfloat16)

    # 1) Module-default example input (1, 10, 512): single 16-row padded tile.
    x = jax.random.normal(kx, (1, 10, M), dtype=jnp.float32).astype(jnp.bfloat16)
    out = jax.block_until_ready(toy_linear_model(x, w1, w2, w3))
    assert out.shape == (1, 10, 1) and out.dtype == jnp.bfloat16
    ref = _reference(x, w1, w2, w3)
    assert jnp.allclose(out.astype(jnp.float32), ref.astype(jnp.float32), atol=1e-2, rtol=1e-2)

    # 2) Larger sequence (1, 300, 512): exercises >=2 grid steps (v7x megacore split),
    #    16-row tail padding, and the lane-dense multi-tile output path.
    x2 = jax.random.normal(kx2, (1, 300, M), dtype=jnp.float32).astype(jnp.bfloat16)
    out2 = jax.block_until_ready(toy_linear_model(x2, w1, w2, w3))
    assert out2.shape == (1, 300, 1) and out2.dtype == jnp.bfloat16
    ref2 = _reference(x2, w1, w2, w3)
    assert jnp.allclose(out2.astype(jnp.float32), ref2.astype(jnp.float32), atol=1e-2, rtol=1e-2)

    print("KERNEL_OK")
</pallas_src>

<mosaic_0001>
module attributes {stable_mosaic.version = 11 : i64} {
  func.func @toy_linear_kernel(%arg0: i32, %arg1: memref<16x512xbf16, #tpu.memory_space<vmem>>, %arg2: memref<512x256xbf16, #tpu.memory_space<vmem>>, %arg3: memref<256x128xbf16, #tpu.memory_space<vmem>>, %arg4: memref<1x128xbf16, #tpu.memory_space<vmem>>, %arg5: memref<1x1x16xbf16, #tpu.memory_space<vmem>>) attributes {dimension_semantics = [#tpu.dimension_semantics<parallel>], iteration_bounds = array<i64: 1>, scalar_prefetch = 0 : i64, scratch_operands = 0 : i64, tpu.core_type = #tpu.core_type<tc>, window_params = [{transform_indices = @transform_0, window_bounds = array<i64: 16, 512>}, {pipeline_mode = #tpu.pipeline_mode<synchronous>, transform_indices = @transform_1, window_bounds = array<i64: 512, 256>}, {pipeline_mode = #tpu.pipeline_mode<synchronous>, transform_indices = @transform_2, window_bounds = array<i64: 256, 128>}, {pipeline_mode = #tpu.pipeline_mode<synchronous>, transform_indices = @transform_3, window_bounds = array<i64: 1, 128>}, {transform_indices = @transform_4, window_bounds = array<i64: 1, 1, 16>}]} {
    %c0 = arith.constant 0 : index
    %c0_0 = arith.constant 0 : index
    %0 = vector.load %arg1[%c0, %c0_0] : memref<16x512xbf16, #tpu.memory_space<vmem>>, vector<16x512xbf16>
    %c0_1 = arith.constant 0 : index
    %c0_2 = arith.constant 0 : index
    %1 = vector.load %arg2[%c0_1, %c0_2] : memref<512x256xbf16, #tpu.memory_space<vmem>>, vector<512x256xbf16>
    %cst = arith.constant dense<0.000000e+00> : vector<16x256xf32>
    %2 = tpu.matmul %0, %1, %cst {dimension_numbers = #tpu.dot_dimension_numbers<[1], [0], [0], [1], [0, 0, 1, 1], [], []>} : vector<16x512xbf16>, vector<512x256xbf16>, vector<16x256xf32> -> vector<16x256xf32>
    %3 = arith.truncf %2 : vector<16x256xf32> to vector<16x256xbf16>
    %c0_3 = arith.constant 0 : index
    %c0_4 = arith.constant 0 : index
    %4 = vector.load %arg3[%c0_3, %c0_4] : memref<256x128xbf16, #tpu.memory_space<vmem>>, vector<256x128xbf16>
    %cst_5 = arith.constant dense<0.000000e+00> : vector<16x128xf32>
    %5 = tpu.matmul %3, %4, %cst_5 {dimension_numbers = #tpu.dot_dimension_numbers<[1], [0], [0], [1], [0, 0, 1, 1], [], []>} : vector<16x256xbf16>, vector<256x128xbf16>, vector<16x128xf32> -> vector<16x128xf32>
    %6 = arith.truncf %5 : vector<16x128xf32> to vector<16x128xbf16>
    %c0_6 = arith.constant 0 : index
    %c0_7 = arith.constant 0 : index
    %7 = vector.load %arg4[%c0_6, %c0_7] : memref<1x128xbf16, #tpu.memory_space<vmem>>, vector<1x128xbf16>
    %8 = arith.extf %7 : vector<1x128xbf16> to vector<1x128xf32>
    %9 = arith.extf %6 : vector<16x128xbf16> to vector<16x128xf32>
    %10 = vector.broadcast %8 : vector<1x128xf32> to vector<16x128xf32>
    %11 = arith.mulf %9, %10 : vector<16x128xf32>
    %cst_8 = arith.constant dense<0.000000e+00> : vector<16xf32>
    %12 = vector.multi_reduction <add>, %11, %cst_8 [1] : vector<16x128xf32> to vector<16xf32>
    %13 = vector.shape_cast %12 : vector<16xf32> to vector<16x1xf32>
    %14 = tpu.transpose %13, [1, 0] : vector<16x1xf32> -> vector<1x16xf32>
    %15 = vector.shape_cast %14 : vector<1x16xf32> to vector<1x1x16xf32>
    %16 = arith.truncf %15 : vector<1x1x16xf32> to vector<1x1x16xbf16>
    %c0_9 = arith.constant 0 : index
    %c0_10 = arith.constant 0 : index
    %c0_11 = arith.constant 0 : index
    %17 = vector.load %arg5[%c0_9, %c0_10, %c0_11] : memref<1x1x16xbf16, #tpu.memory_space<vmem>>, vector<1x1x16xbf16>
    tpu.vector_store %arg5[%c0_9, %c0_10, %c0_11], %16 {strides = array<i32>} : memref<1x1x16xbf16, #tpu.memory_space<vmem>>, vector<1x1x16xbf16>,
    return
  }
  func.func @transform_0(%arg0: i32) -> (i32, i32) {
    %c0_i32 = arith.constant 0 : i32
    %c0_i32_0 = arith.constant 0 : i32
    return %arg0, %c0_i32 : i32, i32
  }
  func.func @transform_1(%arg0: i32) -> (i32, i32) {
    %c0_i32 = arith.constant 0 : i32
    %c0_i32_0 = arith.constant 0 : i32
    %c0_i32_1 = arith.constant 0 : i32
    return %c0_i32, %c0_i32_0 : i32, i32
  }
  func.func @transform_2(%arg0: i32) -> (i32, i32) {
    %c0_i32 = arith.constant 0 : i32
    %c0_i32_0 = arith.constant 0 : i32
    %c0_i32_1 = arith.constant 0 : i32
    return %c0_i32, %c0_i32_0 : i32, i32
  }
  func.func @transform_3(%arg0: i32) -> (i32, i32) {
    %c0_i32 = arith.constant 0 : i32
    %c0_i32_0 = arith.constant 0 : i32
    %c0_i32_1 = arith.constant 0 : i32
    return %c0_i32, %c0_i32_0 : i32, i32
  }
  func.func @transform_4(%arg0: i32) -> (i32, i32, i32) {
    %c0_i32 = arith.constant 0 : i32
    %c0_i32_0 = arith.constant 0 : i32
    %c0_i32_1 = arith.constant 0 : i32
    return %arg0, %c0_i32, %c0_i32_0 : i32, i32, i32
  }
}

</mosaic_0001>

<llo_original>
// kernel: tpu_custom_call.1
$region0: #{tpu_custom_call.1}
  #allocation0 [shape = 'u32[]', space=smem, size = 0x4, offset = 0x4, fixed_abs, tag = 'smem constant byte address 0x4 - core index']
  #allocation1 [shape = 'u32[144,128]{1,0:T(1,128)}', space=vmem, size = 0x12000, scoped, tag = 'internal scratch']
  %s0 = inlined_call_operand.hbm [shape: bf16[16,512], index: 0, kind: input, shape index: {}]
  %s1 = inlined_call_operand.hbm [shape: bf16[512,256], index: 1, kind: input, shape index: {}]
  %s2 = inlined_call_operand.hbm [shape: bf16[256,128], index: 2, kind: input, shape index: {}]
  %s3 = inlined_call_operand.vmem [shape: bf16[1,128], index: 3, kind: input, shape index: {}]
  %s4 = inlined_call_operand.hbm [shape: bf16[1,1,16], index: 4, kind: output, shape index: {}]
  %s5 = sld [smem:[#allocation0]]
  $region38: #{tpu_custom_call.1} parent=0
    _
  %s7 = ssub.s32 1, %s5
  %s8 = scalar_select 0, %s7, %s5
  $region1: #{tpu_custom_call.1} parent=0
    #allocation2 [shape = 'u8[16384]{0}', space=vmem, size = 0x4000, scoped, tag = 'input window, operand 0, single buffered']
    #allocation3 [shape = 's32[1]{0}', space=sflag, size = 0x4, scoped, tag = 'scoped memory for tpu_custom_call.1']
    #allocation4 [shape = 's32[1]{0}', space=sflag, size = 0x4, scoped, tag = 'scoped memory for tpu_custom_call.1']
    #allocation5 [shape = 'u8[262144]{0}', space=vmem, size = 0x40000, scoped, tag = 'input window, operand 1, single buffered']
    #allocation6 [shape = 's32[1]{0}', space=sflag, size = 0x4, scoped, tag = 'scoped memory for tpu_custom_call.1']
    #allocation7 [shape = 'u8[65536]{0}', space=vmem, size = 0x10000, scoped, tag = 'input window, operand 2, single buffered']
    #allocation8 [shape = 'u8[512]{0}', space=vmem, size = 0x400, scoped, tag = 'output window, operand 0, single buffered']
    %9 = vsyncpa [#allocation3], 0
    %10 = vsyncpa [#allocation6], 0
    %11 = vsyncpa [#allocation4], 0
    // Predicated region
    $region2: #{tpu_custom_call.1} parent=1 // pred_check
      _
    $region3: #{tpu_custom_call.1} parent=1 // pred_check_branch
      %13 = sbr.rel (0) target = $region5
    $region4: #{tpu_custom_call.1} parent=1 // pred_region
      %s15 = ssub.s32 512, 512
      %16 = vsyncadd [#allocation3], %s15
      %s17 = sshll.u32 [#allocation2], 4
      %s18 = int_to_ptr.vmem [resolvable:$true] %s17
      %23 = dma.hbm_to_vmem [thread:$0]  %s0, 512, %s18, [#allocation3], 256, 256, 16
    $region5: #{tpu_custom_call.1} parent=1 // pred_fallthru
      _
    // Predicated region
    $region6: #{tpu_custom_call.1} parent=1 // pred_check
      _
    $region7: #{tpu_custom_call.1} parent=1 // pred_check_branch
      %25 = sbr.rel (0) target = $region9
    $region8: #{tpu_custom_call.1} parent=1 // pred_region
      %s27 = ssub.s32 8192, 8192
      %28 = vsyncadd [#allocation6], %s27
      %s29 = sshll.u32 [#allocation5], 4
      %s30 = int_to_ptr.vmem [resolvable:$true] %s29
      %35 = dma.hbm_to_vmem [thread:$0]  %s1, 8192, %s30, [#allocation6], 128, 128, 8
    $region9: #{tpu_custom_call.1} parent=1 // pred_fallthru
      _
    // Predicated region
    $region10: #{tpu_custom_call.1} parent=1 // pred_check
      _
    $region11: #{tpu_custom_call.1} parent=1 // pred_check_branch
      %37 = sbr.rel (0) target = $region13
    $region12: #{tpu_custom_call.1} parent=1 // pred_region
      %s39 = ssub.s32 2048, 2048
      %40 = vsyncadd [#allocation6], %s39
      %s41 = sshll.u32 [#allocation7], 4
      %s42 = int_to_ptr.vmem [resolvable:$true] %s41
      %47 = dma.hbm_to_vmem [thread:$0]  %s2, 2048, %s42, [#allocation6], 64, 64, 4
    $region13: #{tpu_custom_call.1} parent=1 // pred_fallthru
      _
    // Predicated region
    $region14: #{tpu_custom_call.1} parent=1 // pred_check
      _
    $region15: #{tpu_custom_call.1} parent=1 // pred_check_branch
      %49 = sbr.rel (0) target = $region17
    $region16: #{tpu_custom_call.1} parent=1 // pred_region
      _
    $region17: #{tpu_custom_call.1} parent=1 // pred_fallthru
      _
    // Predicated region
    $region18: #{tpu_custom_call.1} parent=1 // pred_check
      _
    $region19: #{tpu_custom_call.1} parent=1 // pred_check_branch
      %51 = sbr.rel (0) target = $region21
    $region20: #{tpu_custom_call.1} parent=1 // pred_region
      %52 = dma.done [#allocation3], 512
    $region21: #{tpu_custom_call.1} parent=1 // pred_fallthru
      _
    // Predicated region
    $region22: #{tpu_custom_call.1} parent=1 // pred_check
      _
    $region23: #{tpu_custom_call.1} parent=1 // pred_check_branch
      %54 = sbr.rel (0) target = $region25
    $region24: #{tpu_custom_call.1} parent=1 // pred_region
      %55 = dma.done [#allocation6], 8192
    $region25: #{tpu_custom_call.1} parent=1 // pred_fallthru
      _
    // Predicated region
    $region26: #{tpu_custom_call.1} parent=1 // pred_check
      _
    $region27: #{tpu_custom_call.1} parent=1 // pred_check_branch
      %57 = sbr.rel (0) target = $region29
    $region28: #{tpu_custom_call.1} parent=1 // pred_region
      %58 = dma.done [#allocation6], 2048
    $region29: #{tpu_custom_call.1} parent=1 // pred_fallthru
      _
    %v60 = vld [vmem:[#allocation2] sm:$0xff]
    %v61 = vld [vmem:[#allocation2 + $0x8] sm:$0xff]
    %v62 = vld [vmem:[#allocation2 + $0x10] sm:$0xff]
    %v63 = vld [vmem:[#allocation2 + $0x18] sm:$0xff]
    %v64 = vld [vmem:[#allocation5] sm:$0xff]
    %v65 = vld [vmem:[#allocation5 + $0x8] sm:$0xff]
    %v66 = vld [vmem:[#allocation5 + $0x10] sm:$0xff]
    %v67 = vld [vmem:[#allocation5 + $0x18] sm:$0xff]
    %v68 = vld [vmem:[#allocation5 + $0x20] sm:$0xff]
    %v69 = vld [vmem:[#allocation5 + $0x28] sm:$0xff]
    %v70 = vld [vmem:[#allocation5 + $0x30] sm:$0xff]
    %v71 = vld [vmem:[#allocation5 + $0x38] sm:$0xff]
    %v72 = vld [vmem:[#allocation5 + $0x40] sm:$0xff]
    %v73 = vld [vmem:[#allocation5 + $0x48] sm:$0xff]
    %v74 = vld [vmem:[#allocation5 + $0x50] sm:$0xff]
    %v75 = vld [vmem:[#allocation5 + $0x58] sm:$0xff]
    %v76 = vld [vmem:[#allocation5 + $0x60] sm:$0xff]
    %v77 = vld [vmem:[#allocation5 + $0x68] sm:$0xff]
    %v78 = vld [vmem:[#allocation5 + $0x70] sm:$0xff]
    %v79 = vld [vmem:[#allocation5 + $0x78] sm:$0xff]
    %v80 = vld [vmem:[#allocation5 + $0x80] sm:$0xff]
    %v81 = vld [vmem:[#allocation5 + $0x88] sm:$0xff]
    %v82 = vld [vmem:[#allocation5 + $0x90] sm:$0xff]
    %v83 = vld [vmem:[#allocation5 + $0x98] sm:$0xff]
    %v84 = vld [vmem:[#allocation5 + $0xa0] sm:$0xff]
    %v85 = vld [vmem:[#allocation5 + $0xa8] sm:$0xff]
    %v86 = vld [vmem:[#allocation5 + $0xb0] sm:$0xff]
    %v87 = vld [vmem:[#allocation5 + $0xb8] sm:$0xff]
    %v88 = vld [vmem:[#allocation5 + $0xc0] sm:$0xff]
    %v89 = vld [vmem:[#allocation5 + $0xc8] sm:$0xff]
    %v90 = vld [vmem:[#allocation5 + $0xd0] sm:$0xff]
    %v91 = vld [vmem:[#allocation5 + $0xd8] sm:$0xff]
    %v92 = vld [vmem:[#allocation5 + $0xe0] sm:$0xff]
    %v93 = vld [vmem:[#allocation5 + $0xe8] sm:$0xff]
    %v94 = vld [vmem:[#allocation5 + $0xf0] sm:$0xff]
    %v95 = vld [vmem:[#allocation5 + $0xf8] sm:$0xff]
    %v96 = vld [vmem:[#allocation5 + $0x100] sm:$0xff]
    %v97 = vld [vmem:[#allocation5 + $0x108] sm:$0xff]
    %v98 = vld [vmem:[#allocation5 + $0x110] sm:$0xff]
    %v99 = vld [vmem:[#allocation5 + $0x118] sm:$0xff]
    %v100 = vld [vmem:[#allocation5 + $0x120] sm:$0xff]
    %v101 = vld [vmem:[#allocation5 + $0x128] sm:$0xff]
    %v102 = vld [vmem:[#allocation5 + $0x130] sm:$0xff]
    %v103 = vld [vmem:[#allocation5 + $0x138] sm:$0xff]
    %v104 = vld [vmem:[#allocation5 + $0x140] sm:$0xff]
    %v105 = vld [vmem:[#allocation5 + $0x148] sm:$0xff]
    %v106 = vld [vmem:[#allocation5 + $0x150] sm:$0xff]
    %v107 = vld [vmem:[#allocation5 + $0x158] sm:$0xff]
    %v108 = vld [vmem:[#allocation5 + $0x160] sm:$0xff]
    %v109 = vld [vmem:[#allocation5 + $0x168] sm:$0xff]
    %v110 = vld [vmem:[#allocation5 + $0x170] sm:$0xff]
    %v111 = vld [vmem:[#allocation5 + $0x178] sm:$0xff]
    %v112 = vld [vmem:[#allocation5 + $0x180] sm:$0xff]
    %v113 = vld [vmem:[#allocation5 + $0x188] sm:$0xff]
    %v114 = vld [vmem:[#allocation5 + $0x190] sm:$0xff]
    %v115 = vld [vmem:[#allocation5 + $0x198] sm:$0xff]
    %v116 = vld [vmem:[#allocation5 + $0x1a0] sm:$0xff]
    %v117 = vld [vmem:[#allocation5 + $0x1a8] sm:$0xff]
    %v118 = vld [vmem:[#allocation5 + $0x1b0] sm:$0xff]
    %v119 = vld [vmem:[#allocation5 + $0x1b8] sm:$0xff]
    %v120 = vld [vmem:[#allocation5 + $0x1c0] sm:$0xff]
    %v121 = vld [vmem:[#allocation5 + $0x1c8] sm:$0xff]
    %v122 = vld [vmem:[#allocation5 + $0x1d0] sm:$0xff]
    %v123 = vld [vmem:[#allocation5 + $0x1d8] sm:$0xff]
    %v124 = vld [vmem:[#allocation5 + $0x1e0] sm:$0xff]
    %v125 = vld [vmem:[#allocation5 + $0x1e8] sm:$0xff]
    %v126 = vld [vmem:[#allocation5 + $0x1f0] sm:$0xff]
    %v127 = vld [vmem:[#allocation5 + $0x1f8] sm:$0xff]
    %v132 = vunpack.c.l.b16 %v60
    %v133 = vunpack.c.h.b16 %v60
    %v134 = vunpack.c.l.b16 %v61
    %v135 = vunpack.c.h.b16 %v61
    %v136 = vunpack.c.l.b16 %v62
    %v137 = vunpack.c.h.b16 %v62
    %v138 = vunpack.c.l.b16 %v63
    %v139 = vunpack.c.h.b16 %v63
    %v140 = vpack.c.b16 %v136, %v132
    %v141 = vpack.c.b16 %v137, %v133
    %v142 = vpack.c.b16 %v138, %v134
    %v143 = vpack.c.b16 %v139, %v135
    %v212 = vunpack.c.l.b16 %v64
    %v213 = vunpack.c.h.b16 %v64
    %v214 = vunpack.c.l.b16 %v65
    %v215 = vunpack.c.h.b16 %v65
    %v216 = vunpack.c.l.b16 %v66
    %v217 = vunpack.c.h.b16 %v66
    %v218 = vunpack.c.l.b16 %v67
    %v219 = vunpack.c.h.b16 %v67
    %v220 = vunpack.c.l.b16 %v68
    %v221 = vunpack.c.h.b16 %v68
    %v222 = vunpack.c.l.b16 %v69
    %v223 = vunpack.c.h.b16 %v69
    %v224 = vunpack.c.l.b16 %v70
    %v225 = vunpack.c.h.b16 %v70
    %v226 = vunpack.c.l.b16 %v71
    %v227 = vunpack.c.h.b16 %v71
    %v228 = vunpack.c.l.b16 %v72
    %v229 = vunpack.c.h.b16 %v72
    %v230 = vunpack.c.l.b16 %v73
    %v231 = vunpack.c.h.b16 %v73
    %v232 = vunpack.c.l.b16 %v74
    %v233 = vunpack.c.h.b16 %v74
    %v234 = vunpack.c.l.b16 %v75
    %v235 = vunpack.c.h.b16 %v75
    %v236 = vunpack.c.l.b16 %v76
    %v237 = vunpack.c.h.b16 %v76
    %v238 = vunpack.c.l.b16 %v77
    %v239 = vunpack.c.h.b16 %v77
    %v240 = vunpack.c.l.b16 %v78
    %v241 = vunpack.c.h.b16 %v78
    %v242 = vunpack.c.l.b16 %v79
    %v243 = vunpack.c.h.b16 %v79
    %v244 = vunpack.c.l.b16 %v80
    %v245 = vunpack.c.h.b16 %v80
    %v246 = vunpack.c.l.b16 %v81
    %v247 = vunpack.c.h.b16 %v81
    %v248 = vunpack.c.l.b16 %v82
    %v249 = vunpack.c.h.b16 %v82
    %v250 = vunpack.c.l.b16 %v83
    %v251 = vunpack.c.h.b16 %v83
    %v252 = vunpack.c.l.b16 %v84
    %v253 = vunpack.c.h.b16 %v84
    %v254 = vunpack.c.l.b16 %v85
    %v255 = vunpack.c.h.b16 %v85
    %v256 = vunpack.c.l.b16 %v86
    %v257 = vunpack.c.h.b16 %v86
    %v258 = vunpack.c.l.b16 %v87
    %v259 = vunpack.c.h.b16 %v87
    %v260 = vunpack.c.l.b16 %v88
    %v261 = vunpack.c.h.b16 %v88
    %v262 = vunpack.c.l.b16 %v89
    %v263 = vunpack.c.h.b16 %v89
    %v264 = vunpack.c.l.b16 %v90
    %v265 = vunpack.c.h.b16 %v90
    %v266 = vunpack.c.l.b16 %v91
    %v267 = vunpack.c.h.b16 %v91
    %v268 = vunpack.c.l.b16 %v92
    %v269 = vunpack.c.h.b16 %v92
    %v270 = vunpack.c.l.b16 %v93
    %v271 = vunpack.c.h.b16 %v93
    %v272 = vunpack.c.l.b16 %v94
    %v273 = vunpack.c.h.b16 %v94
    %v274 = vunpack.c.l.b16 %v95
    %v275 = vunpack.c.h.b16 %v95
    %v276 = vunpack.c.l.b16 %v96
    %v277 = vunpack.c.h.b16 %v96
    %v278 = vunpack.c.l.b16 %v97
    %v279 = vunpack.c.h.b16 %v97
    %v280 = vunpack.c.l.b16 %v98
    %v281 = vunpack.c.h.b16 %v98
    %v282 = vunpack.c.l.b16 %v99
    %v283 = vunpack.c.h.b16 %v99
    %v284 = vunpack.c.l.b16 %v100
    %v285 = vunpack.c.h.b16 %v100
    %v286 = vunpack.c.l.b16 %v101
    %v287 = vunpack.c.h.b16 %v101
    %v288 = vunpack.c.l.b16 %v102
    %v289 = vunpack.c.h.b16 %v102
    %v290 = vunpack.c.l.b16 %v103
    %v291 = vunpack.c.h.b16 %v103
    %v292 = vunpack.c.l.b16 %v104
    %v293 = vunpack.c.h.b16 %v104
    %v294 = vunpack.c.l.b16 %v105
    %v295 = vunpack.c.h.b16 %v105
    %v296 = vunpack.c.l.b16 %v106
    %v297 = vunpack.c.h.b16 %v106
    %v298 = vunpack.c.l.b16 %v107
    %v299 = vunpack.c.h.b16 %v107
    %v300 = vunpack.c.l.b16 %v108
    %v301 = vunpack.c.h.b16 %v108
    %v302 = vunpack.c.l.b16 %v109
    %v303 = vunpack.c.h.b16 %v109
    %v304 = vunpack.c.l.b16 %v110
    %v305 = vunpack.c.h.b16 %v110
    %v306 = vunpack.c.l.b16 %v111
    %v307 = vunpack.c.h.b16 %v111
    %v308 = vunpack.c.l.b16 %v112
    %v309 = vunpack.c.h.b16 %v112
    %v310 = vunpack.c.l.b16 %v113
    %v311 = vunpack.c.h.b16 %v113
    %v312 = vunpack.c.l.b16 %v114
    %v313 = vunpack.c.h.b16 %v114
    %v314 = vunpack.c.l.b16 %v115
    %v315 = vunpack.c.h.b16 %v115
    %v316 = vunpack.c.l.b16 %v116
    %v317 = vunpack.c.h.b16 %v116
    %v318 = vunpack.c.l.b16 %v117
    %v319 = vunpack.c.h.b16 %v117
    %v320 = vunpack.c.l.b16 %v118
    %v321 = vunpack.c.h.b16 %v118
    %v322 = vunpack.c.l.b16 %v119
    %v323 = vunpack.c.h.b16 %v119
    %v324 = vunpack.c.l.b16 %v120
    %v325 = vunpack.c.h.b16 %v120
    %v326 = vunpack.c.l.b16 %v121
    %v327 = vunpack.c.h.b16 %v121
    %v328 = vunpack.c.l.b16 %v122
    %v329 = vunpack.c.h.b16 %v122
    %v330 = vunpack.c.l.b16 %v123
    %v331 = vunpack.c.h.b16 %v123
    %v332 = vunpack.c.l.b16 %v124
    %v333 = vunpack.c.h.b16 %v124
    %v334 = vunpack.c.l.b16 %v125
    %v335 = vunpack.c.h.b16 %v125
    %v336 = vunpack.c.l.b16 %v126
    %v337 = vunpack.c.h.b16 %v126
    %v338 = vunpack.c.l.b16 %v127
    %v339 = vunpack.c.h.b16 %v127
    %v340 = vpack.c.b16 %v214, %v212
    %v341 = vpack.c.b16 %v215, %v213
    %v342 = vpack.c.b16 %v218, %v216
    %v343 = vpack.c.b16 %v219, %v217
    %v344 = vpack.c.b16 %v222, %v220
    %v345 = vpack.c.b16 %v223, %v221
    %v346 = vpack.c.b16 %v226, %v224
    %v347 = vpack.c.b16 %v227, %v225
    %v348 = vpack.c.b16 %v230, %v228
    %v349 = vpack.c.b16 %v231, %v229
    %v350 = vpack.c.b16 %v234, %v232
    %v351 = vpack.c.b16 %v235, %v233
    %v352 = vpack.c.b16 %v238, %v236
    %v353 = vpack.c.b16 %v239, %v237
    %v354 = vpack.c.b16 %v242, %v240
    %v355 = vpack.c.b16 %v243, %v241
    %v356 = vpack.c.b16 %v246, %v244
    %v357 = vpack.c.b16 %v247, %v245
    %v358 = vpack.c.b16 %v250, %v248
    %v359 = vpack.c.b16 %v251, %v249
    %v360 = vpack.c.b16 %v254, %v252
    %v361 = vpack.c.b16 %v255, %v253
    %v362 = vpack.c.b16 %v258, %v256
    %v363 = vpack.c.b16 %v259, %v257
    %v364 = vpack.c.b16 %v262, %v260
    %v365 = vpack.c.b16 %v263, %v261
    %v366 = vpack.c.b16 %v266, %v264
    %v367 = vpack.c.b16 %v267, %v265
    %v368 = vpack.c.b16 %v270, %v268
    %v369 = vpack.c.b16 %v271, %v269
    %v370 = vpack.c.b16 %v274, %v272
    %v371 = vpack.c.b16 %v275, %v273
    %v372 = vpack.c.b16 %v278, %v276
    %v373 = vpack.c.b16 %v279, %v277
    %v374 = vpack.c.b16 %v282, %v280
    %v375 = vpack.c.b16 %v283, %v281
    %v376 = vpack.c.b16 %v286, %v284
    %v377 = vpack.c.b16 %v287, %v285
    %v378 = vpack.c.b16 %v290, %v288
    %v379 = vpack.c.b16 %v291, %v289
    %v380 = vpack.c.b16 %v294, %v292
    %v381 = vpack.c.b16 %v295, %v293
    %v382 = vpack.c.b16 %v298, %v296
    %v383 = vpack.c.b16 %v299, %v297
    %v384 = vpack.c.b16 %v302, %v300
    %v385 = vpack.c.b16 %v303, %v301
    %v386 = vpack.c.b16 %v306, %v304
    %v387 = vpack.c.b16 %v307, %v305
    %v388 = vpack.c.b16 %v310, %v308
    %v389 = vpack.c.b16 %v311, %v309
    %v390 = vpack.c.b16 %v314, %v312
    %v391 = vpack.c.b16 %v315, %v313
    %v392 = vpack.c.b16 %v318, %v316
    %v393 = vpack.c.b16 %v319, %v317
    %v394 = vpack.c.b16 %v322, %v320
    %v395 = vpack.c.b16 %v323, %v321
    %v396 = vpack.c.b16 %v326, %v324
    %v397 = vpack.c.b16 %v327, %v325
    %v398 = vpack.c.b16 %v330, %v328
    %v399 = vpack.c.b16 %v331, %v329
    %v400 = vpack.c.b16 %v334, %v332
    %v401 = vpack.c.b16 %v335, %v333
    %v402 = vpack.c.b16 %v338, %v336
    %v403 = vpack.c.b16 %v339, %v337
    %468 = vmatprep.subr.bf16.mxu0 %v355
    %469 = vmatpush1.bf16.msra.mxu0 %v354
    %470 = vmatprep.subr.bf16.mxu0 %v353
    %471 = vmatpush1.bf16.msra.mxu0 %v352
    %472 = vmatprep.subr.bf16.mxu0 %v351
    %473 = vmatpush1.bf16.msra.mxu0 %v350
    %474 = vmatprep.subr.bf16.mxu0 %v349
    %475 = vmatpush1.bf16.msra.mxu0 %v348
    %476 = vmatprep.subr.bf16.mxu0 %v347
    %477 = vmatpush1.bf16.msra.mxu0 %v346
    %478 = vmatprep.subr.bf16.mxu0 %v345
    %479 = vmatpush1.bf16.msra.mxu0 %v344
    %480 = vmatprep.subr.bf16.mxu0 %v343
    %481 = vmatpush1.bf16.msra.mxu0 %v342
    %482 = vmatprep.subr.bf16.mxu0 %v341
    %483 = vmatpush1.bf16.msra.mxu0 %v340
    %484 = vmatprep.subr.bf16.mxu0 %v371
    %485 = vmatpush2.bf16.msra.mxu0 %v370
    %486 = vmatprep.subr.bf16.mxu0 %v369
    %487 = vmatpush2.bf16.msra.mxu0 %v368
    %488 = vmatprep.subr.bf16.mxu0 %v367
    %489 = vmatpush2.bf16.msra.mxu0 %v366
    %490 = vmatprep.subr.bf16.mxu0 %v365
    %491 = vmatpush2.bf16.msra.mxu0 %v364
    %492 = vmatprep.subr.bf16.mxu0 %v363
    %493 = vmatpush2.bf16.msra.mxu0 %v362
    %494 = vmatprep.subr.bf16.mxu0 %v361
    %495 = vmatpush2.bf16.msra.mxu0 %v360
    %496 = vmatprep.subr.bf16.mxu0 %v359
    %497 = vmatpush2.bf16.msra.mxu0 %v358
    %498 = vmatprep.subr.bf16.mxu0 %v357
    %499 = vmatpush2.bf16.msra.mxu0 %v356
    %500 = vmatprep.mubr.bf16.mxu0 %v141
    %501 = vmatmul.mubr.bf16.gmra.mxu0 %v140
    %v502 = vpop.f32.mrf.mxu0
    %v503 = vadd.f32 0.0, %v502
    %v504 = vpop.f32.mrf.mxu0
    %v505 = vadd.f32 0.0, %v504
    %v506 = vpop.f32.mrf.mxu0
    %v507 = vadd.f32 0.0, %v506
    %v508 = vpop.f32.mrf.mxu0
    %v509 = vadd.f32 0.0, %v508
    %510 = vdwg.mxu0
    %511 = vmatprep.subr.bf16.mxu0 %v387
    %512 = vmatpush1.bf16.msra.mxu0 %v386
    %513 = vmatprep.subr.bf16.mxu0 %v385
    %514 = vmatpush1.bf16.msra.mxu0 %v384
    %515 = vmatprep.subr.bf16.mxu0 %v383
    %516 = vmatpush1.bf16.msra.mxu0 %v382
    %517 = vmatprep.subr.bf16.mxu0 %v381
    %518 = vmatpush1.bf16.msra.mxu0 %v380
    %519 = vmatprep.subr.bf16.mxu0 %v379
    %520 = vmatpush1.bf16.msra.mxu0 %v378
    %521 = vmatprep.subr.bf16.mxu0 %v377
    %522 = vmatpush1.bf16.msra.mxu0 %v376
    %523 = vmatprep.subr.bf16.mxu0 %v375
    %524 = vmatpush1.bf16.msra.mxu0 %v374
    %525 = vmatprep.subr.bf16.mxu0 %v373
    %526 = vmatpush1.bf16.msra.mxu0 %v372
    %527 = vmatprep.subr.bf16.mxu0 %v403
    %528 = vmatpush2.bf16.msra.mxu0 %v402
    %529 = vmatprep.subr.bf16.mxu0 %v401
    %530 = vmatpush2.bf16.msra.mxu0 %v400
    %531 = vmatprep.subr.bf16.mxu0 %v399
    %532 = vmatpush2.bf16.msra.mxu0 %v398
    %533 = vmatprep.subr.bf16.mxu0 %v397
    %534 = vmatpush2.bf16.msra.mxu0 %v396
    %535 = vmatprep.subr.bf16.mxu0 %v395
    %536 = vmatpush2.bf16.msra.mxu0 %v394
    %537 = vmatprep.subr.bf16.mxu0 %v393
    %538 = vmatpush2.bf16.msra.mxu0 %v392
    %539 = vmatprep.subr.bf16.mxu0 %v391
    %540 = vmatpush2.bf16.msra.mxu0 %v390
    %541 = vmatprep.subr.bf16.mxu0 %v389
    %542 = vmatpush2.bf16.msra.mxu0 %v388
    %543 = vmatprep.mubr.bf16.mxu0 %v143
    %544 = vmatmul.mubr.bf16.gmra.mxu0 %v142
    %v545 = vpop.f32.mrf.mxu0
    %v546 = vadd.f32 %v503, %v545
    %v547 = vpop.f32.mrf.mxu0
    %v548 = vadd.f32 %v505, %v547
    %v549 = vpop.f32.mrf.mxu0
    %v550 = vadd.f32 %v507, %v549
    %v551 = vpop.f32.mrf.mxu0
    %v552 = vadd.f32 %v509, %v551
    %553 = vdwg.mxu0
    %v554 = vpack.c.bf16 %v550, %v546
    %v555 = vpack.c.bf16 %v552, %v548
    %v556 = vld [vmem:[#allocation7] sm:$0xf]
    %v557 = vld [vmem:[#allocation7 + $0x4] sm:$0xf]
    %v558 = vld [vmem:[#allocation7 + $0x8] sm:$0xf]
    %v559 = vld [vmem:[#allocation7 + $0xc] sm:$0xf]
    %v560 = vld [vmem:[#allocation7 + $0x10] sm:$0xf]
    %v561 = vld [vmem:[#allocation7 + $0x14] sm:$0xf]
    %v562 = vld [vmem:[#allocation7 + $0x18] sm:$0xf]
    %v563 = vld [vmem:[#allocation7 + $0x1c] sm:$0xf]
    %v564 = vld [vmem:[#allocation7 + $0x20] sm:$0xf]
    %v565 = vld [vmem:[#allocation7 + $0x24] sm:$0xf]
    %v566 = vld [vmem:[#allocation7 + $0x28] sm:$0xf]
    %v567 = vld [vmem:[#allocation7 + $0x2c] sm:$0xf]
    %v568 = vld [vmem:[#allocation7 + $0x30] sm:$0xf]
    %v569 = vld [vmem:[#allocation7 + $0x34] sm:$0xf]
    %v570 = vld [vmem:[#allocation7 + $0x38] sm:$0xf]
    %v571 = vld [vmem:[#allocation7 + $0x3c] sm:$0xf]
    %v572 = vld [vmem:[#allocation7 + $0x40] sm:$0xf]
    %v573 = vld [vmem:[#allocation7 + $0x44] sm:$0xf]
    %v574 = vld [vmem:[#allocation7 + $0x48] sm:$0xf]
    %v575 = vld [vmem:[#allocation7 + $0x4c] sm:$0xf]
    %v576 = vld [vmem:[#allocation7 + $0x50] sm:$0xf]
    %v577 = vld [vmem:[#allocation7 + $0x54] sm:$0xf]
    %v578 = vld [vmem:[#allocation7 + $0x58] sm:$0xf]
    %v579 = vld [vmem:[#allocation7 + $0x5c] sm:$0xf]
    %v580 = vld [vmem:[#allocation7 + $0x60] sm:$0xf]
    %v581 = vld [vmem:[#allocation7 + $0x64] sm:$0xf]
    %v582 = vld [vmem:[#allocation7 + $0x68] sm:$0xf]
    %v583 = vld [vmem:[#allocation7 + $0x6c] sm:$0xf]
    %v584 = vld [vmem:[#allocation7 + $0x70] sm:$0xf]
    %v585 = vld [vmem:[#allocation7 + $0x74] sm:$0xf]
    %v586 = vld [vmem:[#allocation7 + $0x78] sm:$0xf]
    %v587 = vld [vmem:[#allocation7 + $0x7c] sm:$0xf]
    %v620 = vunpack.c.l.b16 %v556
    %v621 = vunpack.c.l.b16 %v557
    %v622 = vunpack.c.l.b16 %v558
    %v623 = vunpack.c.l.b16 %v559
    %v624 = vunpack.c.l.b16 %v560
    %v625 = vunpack.c.l.b16 %v561
    %v626 = vunpack.c.l.b16 %v562
    %v627 = vunpack.c.l.b16 %v563
    %v628 = vunpack.c.l.b16 %v564
    %v629 = vunpack.c.l.b16 %v565
    %v630 = vunpack.c.l.b16 %v566
    %v631 = vunpack.c.l.b16 %v567
    %v632 = vunpack.c.l.b16 %v568
    %v633 = vunpack.c.l.b16 %v569
    %v634 = vunpack.c.l.b16 %v570
    %v635 = vunpack.c.l.b16 %v571
    %v636 = vunpack.c.l.b16 %v572
    %v637 = vunpack.c.l.b16 %v573
    %v638 = vunpack.c.l.b16 %v574
    %v639 = vunpack.c.l.b16 %v575
    %v640 = vunpack.c.l.b16 %v576
    %v641 = vunpack.c.l.b16 %v577
    %v642 = vunpack.c.l.b16 %v578
    %v643 = vunpack.c.l.b16 %v579
    %v644 = vunpack.c.l.b16 %v580
    %v645 = vunpack.c.l.b16 %v581
    %v646 = vunpack.c.l.b16 %v582
    %v647 = vunpack.c.l.b16 %v583
    %v648 = vunpack.c.l.b16 %v584
    %v649 = vunpack.c.l.b16 %v585
    %v650 = vunpack.c.l.b16 %v586
    %v651 = vunpack.c.l.b16 %v587
    %v652 = vpack.c.b16 %v621, %v620
    %v653 = vpack.c.b16 %v623, %v622
    %v654 = vpack.c.b16 %v625, %v624
    %v655 = vpack.c.b16 %v627, %v626
    %v656 = vpack.c.b16 %v629, %v628
    %v657 = vpack.c.b16 %v631, %v630
    %v658 = vpack.c.b16 %v633, %v632
    %v659 = vpack.c.b16 %v635, %v634
    %v660 = vpack.c.b16 %v637, %v636
    %v661 = vpack.c.b16 %v639, %v638
    %v662 = vpack.c.b16 %v641, %v640
    %v663 = vpack.c.b16 %v643, %v642
    %v664 = vpack.c.b16 %v645, %v644
    %v665 = vpack.c.b16 %v647, %v646
    %v666 = vpack.c.b16 %v649, %v648
    %v667 = vpack.c.b16 %v651, %v650
    %684 = vmatprep.subr.bf16.mxu0 0
    %685 = vmatpush1.bf16.msra.mxu0 %v659
    %686 = vmatprep.subr.bf16.mxu0 0
    %687 = vmatpush1.bf16.msra.mxu0 %v658
    %688 = vmatprep.subr.bf16.mxu0 0
    %689 = vmatpush1.bf16.msra.mxu0 %v657
    %690 = vmatprep.subr.bf16.mxu0 0
    %691 = vmatpush1.bf16.msra.mxu0 %v656
    %692 = vmatprep.subr.bf16.mxu0 0
    %693 = vmatpush1.bf16.msra.mxu0 %v655
    %694 = vmatprep.subr.bf16.mxu0 0
    %695 = vmatpush1.bf16.msra.mxu0 %v654
    %696 = vmatprep.subr.bf16.mxu0 0
    %697 = vmatpush1.bf16.msra.mxu0 %v653
    %698 = vmatprep.subr.bf16.mxu0 0
    %699 = vmatpush1.bf16.msra.mxu0 %v652
    %700 = vmatprep.subr.bf16.mxu0 0
    %701 = vmatpush2.bf16.msra.mxu0 %v667
    %702 = vmatprep.subr.bf16.mxu0 0
    %703 = vmatpush2.bf16.msra.mxu0 %v666
    %704 = vmatprep.subr.bf16.mxu0 0
    %705 = vmatpush2.bf16.msra.mxu0 %v665
    %706 = vmatprep.subr.bf16.mxu0 0
    %707 = vmatpush2.bf16.msra.mxu0 %v664
    %708 = vmatprep.subr.bf16.mxu0 0
    %709 = vmatpush2.bf16.msra.mxu0 %v663
    %710 = vmatprep.subr.bf16.mxu0 0
    %711 = vmatpush2.bf16.msra.mxu0 %v662
    %712 = vmatprep.subr.bf16.mxu0 0
    %713 = vmatpush2.bf16.msra.mxu0 %v661
    %714 = vmatprep.subr.bf16.mxu0 0
    %715 = vmatpush2.bf16.msra.mxu0 %v660
    %716 = vmatprep.mubr.bf16.mxu0 %v555
    %717 = vmatmul.mubr.bf16.gmra.mxu0 %v554
    %v718 = vpop.f32.mrf.mxu0
    %v719 = vadd.f32 0.0, %v718
    %v720 = vpop.f32.mrf.mxu0
    %v721 = vpop.f32.mrf.mxu0
    %v722 = vadd.f32 0.0, %v721
    %v723 = vpop.f32.mrf.mxu0
    %724 = vdwg.mxu0
    %v725 = vpack.c.bf16 %v722, %v719
    %v726 = vld [vmem:[%s3] sm:$0x1]
    %v727 = vunpack.c.l.bf16 %v726
    %v728 = vunpack.c.l.bf16 %v725
    %v729 = vunpack.c.h.bf16 %v725
    %v730 = vlaneseq
    %v731 = vshrl.u32 %v730, 7
    %v732 = vsub.s32 0, %v731
    %v733 = vrot.slane %v727, %v732
    %v734 = vmul.f32 %v728, %v733
    %v735 = vmul.f32 %v729, %v733
    %736 = vadd.xlane.f32.xlu0 %v734
    %v737 = vpop.xlane.xlu0 %736
    %738 = vadd.xlane.f32.xlu0 %v735
    %v739 = vpop.xlane.xlu0 %738
    %740 = vxpose.xlu0.b32.start [1/16] %v737, 128
    %741 = vxpose.xlu0.b32.cont [2/16] %v739, 128
    %742 = vxpose.xlu0.b32.cont [3/16] 0.0, 128
    %743 = vxpose.xlu0.b32.cont [4/16] 0.0, 128
    %744 = vxpose.xlu0.b32.cont [5/16] 0.0, 128
    %745 = vxpose.xlu0.b32.cont [6/16] 0.0, 128
    %746 = vxpose.xlu0.b32.cont [7/16] 0.0, 128
    %747 = vxpose.xlu0.b32.cont [8/16] 0.0, 128
    %748 = vxpose.xlu0.b32.cont [9/16] 0.0, 128
    %749 = vxpose.xlu0.b32.cont [10/16] 0.0, 128
    %750 = vxpose.xlu0.b32.cont [11/16] 0.0, 128
    %751 = vxpose.xlu0.b32.cont [12/16] 0.0, 128
    %752 = vxpose.xlu0.b32.cont [13/16] 0.0, 128
    %753 = vxpose.xlu0.b32.cont [14/16] 0.0, 128
    %754 = vxpose.xlu0.b32.cont [15/16] 0.0, 128
    %755 = vxpose.xlu0.b32.end [16/16] 0.0, 128
    %v756 = vpop.trf.xlu0
    %v757 = vpop.trf.xlu0
    %v758 = vpop.trf.xlu0
    %v759 = vpop.trf.xlu0
    %v760 = vpop.trf.xlu0
    %v761 = vpop.trf.xlu0
    %v762 = vpop.trf.xlu0
    %v763 = vpop.trf.xlu0
    %v764 = vpop.trf.xlu0
    %v765 = vpop.trf.xlu0
    %v766 = vpop.trf.xlu0
    %v767 = vpop.trf.xlu0
    %v768 = vpop.trf.xlu0
    %v769 = vpop.trf.xlu0
    %v770 = vpop.trf.xlu0
    %v771 = vpop.trf.xlu0
    %v772 = vpack.c.bf16 %v756, %v756
    %vm773 = vcmask 122880
    %vm774 = vsmask.f32 256
    %vm775 = vmand %vm773, %vm774
    %v776 = vld [vmem:[#allocation8] sm:$0x1]
    %v777 = vsel %vm775, %v772, %v776
    %778 = vst [vmem:[#allocation8] sm:$0x1] %v777
    // Predicated region
    $region30: #{tpu_custom_call.1} parent=1 // pred_check
      _
    $region31: #{tpu_custom_call.1} parent=1 // pred_check_branch
      %780 = sbr.rel (0) target = $region33
    $region32: #{tpu_custom_call.1} parent=1 // pred_region
      %s782 = ssub.s32 16, 16
      %783 = vsyncadd [#allocation4], %s782
      %s785 = sshll.u32 [#allocation8], 4
      %s786 = int_to_ptr.vmem [resolvable:$true] %s785
      %788 = dma.vmem_to_hbm [thread:$0]  %s786, 16, %s4, [#allocation4]
    $region33: #{tpu_custom_call.1} parent=1 // pred_fallthru
      _
    // Predicated region
    $region34: #{tpu_custom_call.1} parent=1 // pred_check
      _
    $region35: #{tpu_custom_call.1} parent=1 // pred_check_branch
      %790 = sbr.rel (0) target = $region37
    $region36: #{tpu_custom_call.1} parent=1 // pred_region
      %791 = dma.done [#allocation4], 16
    $region37: #{tpu_custom_call.1} parent=1 // pred_fallthru
      _
    %792 = vsyncpa [#allocation3], 1
    %793 = vsyncpa [#allocation6], 1
    %794 = vsyncpa [#allocation4], 1

</llo_original>
